<compile_context>
chip_gen: v7x
topology: tpu7x:2x2x1
jax: 0.10.0
libtpu: 0.0.40
codegen_flags: <defaults>
</compile_context>

<pallas_src>
import functools

import jax
import jax.numpy as jnp
from jax import lax
from jax.experimental import pallas as pl
from jax.experimental.pallas import tpu as pltpu

EMD_DIM = 200


def _round_up(x, m):
    return ((x + m - 1) // m) * m


def _atom_encoder_kernel(x_ref, emb_ref, o_ref):
    # x_ref:   (TN, C)          int32 node features for this tile
    # emb_ref: (C*EPAD, H)      f32 vocab-padded, flattened embedding tables
    # o_ref:   (TN, H)          f32 summed embeddings for this tile
    tn, n_ch = x_ref.shape
    epad = emb_ref.shape[0] // n_ch

    idx = x_ref[...]                                            # (TN, C) int32
    vocab = lax.broadcasted_iota(jnp.int32, (tn, epad), 1)      # (TN, EPAD)

    # One 256-wide compare per channel (lane-broadcast of a 1-wide column),
    # concatenated into a lane-aligned (TN, C*EPAD) one-hot.  Padded vocab
    # rows (>= EMD_DIM) are never selected, so the matmul result is exact.
    onehot = jnp.concatenate(
        [(vocab == idx[:, c:c + 1]).astype(emb_ref.dtype) for c in range(n_ch)],
        axis=1,
    )                                                           # (TN, C*EPAD)

    # Single MXU contraction with K = C*EPAD (multiple of 256), f32 accumulate.
    o_ref[...] = jnp.dot(
        onehot, emb_ref[...], preferred_element_type=jnp.float32
    ).astype(o_ref.dtype)


@functools.partial(jax.jit, static_argnames=("tile_n",))
def atom_encoder_forward(x, emb_tables, *, tile_n=1024):
    """Pallas TPU implementation of AtomEncoder.forward(x).

    x:           (N, C) integer indices into [0, EMD_DIM)
    emb_tables:  (C, EMD_DIM, hidden) f32, one embedding table per channel
    returns:     (N, hidden) f32
    """
    x = x.astype(jnp.int32)
    n, c = x.shape
    c2, e, h = emb_tables.shape
    assert c2 == c, (c2, c)

    # Pad vocab to a 256-row MXU-aligned slab per channel and flatten to 2-D.
    epad = _round_up(e, 256)
    emb_flat = jnp.pad(
        emb_tables, ((0, 0), (0, epad - e), (0, 0))
    ).reshape(c * epad, h)

    # Node tile: big to amortize per-grid-step overhead, sublane-aligned (8),
    # but capped so the grid has >= 2 steps (shards across v7x's two TCs).
    desired = min(tile_n, _round_up(n, 8))
    half = _round_up(pl.cdiv(n, 2), 8)
    tn = max(8, min(desired, half))
    n_pad = _round_up(n, tn)
    if n_pad != n:
        # Padded rows use index 0 -> garbage rows that are sliced off below.
        x = jnp.pad(x, ((0, n_pad - n), (0, 0)))

    out = pl.pallas_call(
        _atom_encoder_kernel,
        out_shape=jax.ShapeDtypeStruct((n_pad, h), emb_tables.dtype),
        grid=(n_pad // tn,),
        in_specs=[
            # node-feature tile, streamed along the (parallel) grid axis
            pl.BlockSpec((tn, c), lambda i: (i, 0)),
            # full flattened table, same block every step (stays VMEM-resident)
            pl.BlockSpec((c * epad, h), lambda i: (0, 0)),
        ],
        out_specs=pl.BlockSpec((tn, h), lambda i: (i, 0)),
        compiler_params=pltpu.CompilerParams(
            dimension_semantics=("parallel",),
        ),
    )(x, emb_flat)
    return out[:n]


def _atom_encoder_ref(x, emb_tables):
    # Pure-JAX reference matching the PyTorch loop exactly.
    out = jnp.zeros((x.shape[0], emb_tables.shape[2]), emb_tables.dtype)
    for c in range(x.shape[1]):
        out = out + emb_tables[c][x[:, c]]
    return out


if __name__ == "__main__":
    key = jax.random.PRNGKey(0)
    k_x, k_w = jax.random.split(key)

    # Small shapes consistent with the module: N graph nodes, C integer
    # features per node, hidden embedding dim.
    N, C, H = 64, 4, 64

    x = jax.random.randint(k_x, (N, C), 0, EMD_DIM, dtype=jnp.int32)

    # Xavier-uniform init per table, mirroring torch.nn.init.xavier_uniform_.
    bound = (6.0 / (EMD_DIM + H)) ** 0.5
    emb_tables = jax.random.uniform(
        k_w, (C, EMD_DIM, H), jnp.float32, minval=-bound, maxval=bound)

    out = atom_encoder_forward(x, emb_tables)
    out = jax.block_until_ready(out)

    ref = _atom_encoder_ref(x, emb_tables)
    assert out.shape == (N, H), out.shape
    assert jnp.allclose(out, ref, atol=1e-5, rtol=1e-5), (
        jnp.max(jnp.abs(out - ref)))
    print("KERNEL_OK")
</pallas_src>

<mosaic_0001>
module attributes {stable_mosaic.version = 11 : i64} {
  func.func @_atom_encoder_kernel(%arg0: i32, %arg1: memref<32x4xi32, #tpu.memory_space<vmem>>, %arg2: memref<1024x64xf32, #tpu.memory_space<vmem>>, %arg3: memref<32x64xf32, #tpu.memory_space<vmem>>) attributes {dimension_semantics = [#tpu.dimension_semantics<parallel>], iteration_bounds = array<i64: 2>, scalar_prefetch = 0 : i64, scratch_operands = 0 : i64, tpu.core_type = #tpu.core_type<tc>, window_params = [{transform_indices = @transform_0, window_bounds = array<i64: 32, 4>}, {pipeline_mode = #tpu.pipeline_mode<synchronous>, transform_indices = @transform_1, window_bounds = array<i64: 1024, 64>}, {transform_indices = @transform_2, window_bounds = array<i64: 32, 64>}]} {
    %c0 = arith.constant 0 : index
    %c0_0 = arith.constant 0 : index
    %0 = vector.load %arg1[%c0, %c0_0] : memref<32x4xi32, #tpu.memory_space<vmem>>, vector<32x4xi32>
    %1 = tpu.iota {dimensions = array<i32: 1>} : vector<32x256xi32>
    %2 = vector.extract_strided_slice %0 {offsets = [0, 0], sizes = [32, 1], strides = [1, 1]} : vector<32x4xi32> to vector<32x1xi32>
    %3 = vector.broadcast %2 : vector<32x1xi32> to vector<32x256xi32>
    %4 = arith.cmpi eq, %1, %3 : vector<32x256xi32>
    %5 = arith.extui %4 : vector<32x256xi1> to vector<32x256xi32>
    %6 = arith.sitofp %5 : vector<32x256xi32> to vector<32x256xf32>
    %7 = vector.extract_strided_slice %0 {offsets = [0, 1], sizes = [32, 1], strides = [1, 1]} : vector<32x4xi32> to vector<32x1xi32>
    %8 = vector.broadcast %7 : vector<32x1xi32> to vector<32x256xi32>
    %9 = arith.cmpi eq, %1, %8 : vector<32x256xi32>
    %10 = arith.extui %9 : vector<32x256xi1> to vector<32x256xi32>
    %11 = arith.sitofp %10 : vector<32x256xi32> to vector<32x256xf32>
    %12 = vector.extract_strided_slice %0 {offsets = [0, 2], sizes = [32, 1], strides = [1, 1]} : vector<32x4xi32> to vector<32x1xi32>
    %13 = vector.broadcast %12 : vector<32x1xi32> to vector<32x256xi32>
    %14 = arith.cmpi eq, %1, %13 : vector<32x256xi32>
    %15 = arith.extui %14 : vector<32x256xi1> to vector<32x256xi32>
    %16 = arith.sitofp %15 : vector<32x256xi32> to vector<32x256xf32>
    %17 = vector.extract_strided_slice %0 {offsets = [0, 3], sizes = [32, 1], strides = [1, 1]} : vector<32x4xi32> to vector<32x1xi32>
    %18 = vector.broadcast %17 : vector<32x1xi32> to vector<32x256xi32>
    %19 = arith.cmpi eq, %1, %18 : vector<32x256xi32>
    %20 = arith.extui %19 : vector<32x256xi1> to vector<32x256xi32>
    %21 = arith.sitofp %20 : vector<32x256xi32> to vector<32x256xf32>
    %22 = tpu.concatenate %6, %11, %16, %21 in 1 : vector<32x256xf32>, vector<32x256xf32>, vector<32x256xf32>, vector<32x256xf32> -> vector<32x1024xf32>
    %c0_1 = arith.constant 0 : index
    %c0_2 = arith.constant 0 : index
    %23 = vector.load %arg2[%c0_1, %c0_2] : memref<1024x64xf32, #tpu.memory_space<vmem>>, vector<1024x64xf32>
    %cst = arith.constant dense<0.000000e+00> : vector<32x64xf32>
    %24 = tpu.matmul %22, %23, %cst {dimension_numbers = #tpu.dot_dimension_numbers<[1], [0], [0], [1], [0, 0, 1, 1], [], []>} : vector<32x1024xf32>, vector<1024x64xf32>, vector<32x64xf32> -> vector<32x64xf32>
    %c0_3 = arith.constant 0 : index
    %c0_4 = arith.constant 0 : index
    %25 = vector.load %arg3[%c0_3, %c0_4] : memref<32x64xf32, #tpu.memory_space<vmem>>, vector<32x64xf32>
    tpu.vector_store %arg3[%c0_3, %c0_4], %24 {strides = array<i32>} : memref<32x64xf32, #tpu.memory_space<vmem>>, vector<32x64xf32>,
    return
  }
  func.func @transform_0(%arg0: i32) -> (i32, i32) {
    %c0_i32 = arith.constant 0 : i32
    %c0_i32_0 = arith.constant 0 : i32
    return %arg0, %c0_i32 : i32, i32
  }
  func.func @transform_1(%arg0: i32) -> (i32, i32) {
    %c0_i32 = arith.constant 0 : i32
    %c0_i32_0 = arith.constant 0 : i32
    %c0_i32_1 = arith.constant 0 : i32
    return %c0_i32, %c0_i32_0 : i32, i32
  }
  func.func @transform_2(%arg0: i32) -> (i32, i32) {
    %c0_i32 = arith.constant 0 : i32
    %c0_i32_0 = arith.constant 0 : i32
    return %arg0, %c0_i32 : i32, i32
  }
}

</mosaic_0001>

<llo_original>
// kernel: atom_encoder_forward.1
$region0: #{atom_encoder_forward.1}
  #allocation0 [shape = 'u32[]', space=smem, size = 0x4, offset = 0x4, fixed_abs, tag = 'smem constant byte address 0x4 - core index']
  #allocation1 [shape = 'u32[144,128]{1,0:T(1,128)}', space=vmem, size = 0x12000, scoped, tag = 'internal scratch']
  %s0 = inlined_call_operand.vmem [shape: s32[64,4], index: 0, kind: input, shape index: {}]
  %s1 = inlined_call_operand.vmem [shape: f32[1024,64], index: 1, kind: input, shape index: {}]
  %s2 = inlined_call_operand.hbm [shape: f32[64,64], index: 2, kind: output, shape index: {}]
  %s3 = sld [smem:[#allocation0]]
  $region41: #{atom_encoder_forward.1} parent=0
    _
  %s5 = ssub.s32 1, %s3
  %s6 = scalar_select 0, %s5, %s3
  $region1: #{atom_encoder_forward.1} parent=0
    #allocation2 [shape = 'u8[32768]{0}', space=vmem, size = 0x8000, scoped, tag = 'output window, operand 0']
    #allocation3 [shape = 's32[2]{0}', space=sflag, size = 0x8, scoped, tag = 'scoped memory for atom_encoder_forward.1']
    %7 = vsyncpa [#allocation3], 0
    %s8 = scalar_lea.sflag [#allocation3], 1
    %9 = vsyncpa %s8, 0
    loop: start=0, step=1, limit=4
    $region2: #{atom_encoder_forward.1} parent=1 // loop_pre_header
      _
    $region3: #{atom_encoder_forward.1} parent=1 // loop_header
      %s11 = sphi 0, %s15
      %p12 = scmp.ge.s32.totalorder %s11, 4
      %s21 = sphi 0, %s23
      %s24 = sphi 0, %s21
      %s25 = sphi 0, %s24
      %s41 = sphi 0, %s25
      %s45 = sphi 0, %s45
      %s47 = sphi 0, %s45
      %s48 = sphi 0, %s47
      %s62 = sphi 0, %s48
      %s68 = sphi 0, %s70
      %s71 = sphi 0, %s68
      %s72 = sphi 0, %s71
      %s88 = sphi 0, %s72
    $region4: #{atom_encoder_forward.1} parent=1 // loop_header_branch
      %14 = sbr.rel (%p12) target = $region8
    $region5: #{atom_encoder_forward.1} parent=1 // loop_body
      %s16 = ssub.s32 %s11, 1
      %s17 = ssub.s32 %s11, 2
      %s18 = sadd.s32 %s11, 1
      %s19 = ssub.s32 %s11, %s18
      %p20 = scmp.eq.s32.totalorder %s19, 0
      %s22 = sadd.s32 %s21, 1
      %s23 = scalar_select %p20, %s21, %s22
      %p26 = pneg %p20
      %p27 = scmp.eq.s32.totalorder %s11, 1
      %p28 = por %p26, %p27
      %p29 = scmp.ne.s32.totalorder %s21, %s24
      %p30 = scmp.eq.s32.totalorder %s11, 0
      %p31 = por %p29, %p30
      %p32 = scmp.ne.s32.totalorder %s21, %s24
      %p33 = scmp.eq.s32.totalorder %s16, 1
      %p34 = por %p32, %p33
      %p35 = scmp.ne.s32.totalorder %s24, %s25
      %p36 = scmp.eq.s32.totalorder %s16, 0
      %p37 = por %p35, %p36
      %p38 = scmp.ne.s32.totalorder %s24, %s25
      %p39 = scmp.eq.s32.totalorder %s17, 1
      %p40 = por %p38, %p39
      %p42 = scmp.ne.s32.totalorder %s25, %s41
      %p43 = scmp.eq.s32.totalorder %s17, 0
      %p44 = por %p42, %p43
      %s46 = sadd.s32 %s45, 1
      %p49 = scmp.eq.s32.totalorder %s11, 1
      %p50 = scmp.ne.s32.totalorder %s45, %s47
      %p51 = scmp.eq.s32.totalorder %s11, 0
      %p52 = por %p50, %p51
      %p53 = scmp.ne.s32.totalorder %s45, %s47
      %p54 = scmp.eq.s32.totalorder %s16, 1
      %p55 = por %p53, %p54
      %p56 = scmp.ne.s32.totalorder %s47, %s48
      %p57 = scmp.eq.s32.totalorder %s16, 0
      %p58 = por %p56, %p57
      %p59 = scmp.ne.s32.totalorder %s47, %s48
      %p60 = scmp.eq.s32.totalorder %s17, 1
      %p61 = por %p59, %p60
      %p63 = scmp.ne.s32.totalorder %s48, %s62
      %p64 = scmp.eq.s32.totalorder %s17, 0
      %p65 = por %p63, %p64
      %s66 = ssub.s32 %s11, %s18
      %p67 = scmp.eq.s32.totalorder %s66, 0
      %s69 = sadd.s32 %s68, 1
      %s70 = scalar_select %p67, %s68, %s69
      %p73 = pneg %p67
      %p74 = scmp.eq.s32.totalorder %s11, 1
      %p75 = por %p73, %p74
      %p76 = scmp.ne.s32.totalorder %s68, %s71
      %p77 = scmp.eq.s32.totalorder %s11, 0
      %p78 = por %p76, %p77
      %p79 = scmp.ne.s32.totalorder %s68, %s71
      %p80 = scmp.eq.s32.totalorder %s16, 1
      %p81 = por %p79, %p80
      %p82 = scmp.ne.s32.totalorder %s71, %s72
      %p83 = scmp.eq.s32.totalorder %s16, 0
      %p84 = por %p82, %p83
      %p85 = scmp.ne.s32.totalorder %s71, %s72
      %p86 = scmp.eq.s32.totalorder %s17, 1
      %p87 = por %p85, %p86
      %p89 = scmp.ne.s32.totalorder %s72, %s88
      %p90 = scmp.eq.s32.totalorder %s17, 0
      %p91 = por %p89, %p90
      %p92 = scmp.le.s32.totalorder 1, %s11
      %p93 = scmp.lt.s32.totalorder %s11, 3
      %p94 = pnand %p92, %p93
      %p95 = pneg %p94
      // Predicated region
      $region9: #{atom_encoder_forward.1} parent=5 // pred_check
        _
      $region10: #{atom_encoder_forward.1} parent=5 // pred_check_branch
        %97 = sbr.rel (%p94) target = $region12
      $region11: #{atom_encoder_forward.1} parent=5 // pred_region
        %s98 = ssub.s32 %s11, 1
        // Predicated region
        $region13: #{atom_encoder_forward.1} parent=11 // pred_check
          %p99 = pneg %p58
        $region14: #{atom_encoder_forward.1} parent=11 // pred_check_branch
          %101 = sbr.rel (%p99) target = $region16
        $region15: #{atom_encoder_forward.1} parent=11 // pred_region
          _
        $region16: #{atom_encoder_forward.1} parent=11 // pred_fallthru
          _
      $region12: #{atom_encoder_forward.1} parent=5 // pred_fallthru
        _
      %p102 = scmp.lt.s32.totalorder %s11, 2
      // Predicated region
      $region17: #{atom_encoder_forward.1} parent=5 // pred_check
        %p103 = pneg %p102
      $region18: #{atom_encoder_forward.1} parent=5 // pred_check_branch
        %105 = sbr.rel (%p103) target = $region20
      $region19: #{atom_encoder_forward.1} parent=5 // pred_region
        // Predicated region
        $region21: #{atom_encoder_forward.1} parent=19 // pred_check
          %p106 = pneg %p31
        $region22: #{atom_encoder_forward.1} parent=19 // pred_check_branch
          %108 = sbr.rel (%p106) target = $region24
        $region23: #{atom_encoder_forward.1} parent=19 // pred_region
          %s109 = smul.u32 4, %s11
          %p110 = scmp.lt.s32.totalorder %s109, 7
          %s111 = scalar_select %p110, %s109, 7
          %s112 = smul.addr %s111, 8
          %s113 = scalar_lea.vmem %s0, %s112
          %s114 = smul.u32 4, %s11
        $region24: #{atom_encoder_forward.1} parent=19 // pred_fallthru
          _
      $region20: #{atom_encoder_forward.1} parent=5 // pred_fallthru
        _
      %p115 = scmp.le.s32.totalorder 1, %s11
      %p116 = scmp.lt.s32.totalorder %s11, 3
      %p117 = pnand %p115, %p116
      %p118 = pneg %p117
      // Predicated region
      $region25: #{atom_encoder_forward.1} parent=5 // pred_check
        _
      $region26: #{atom_encoder_forward.1} parent=5 // pred_check_branch
        %120 = sbr.rel (%p117) target = $region28
      $region27: #{atom_encoder_forward.1} parent=5 // pred_region
        %s121 = ssub.s32 %s11, 1
        %s122 = smul.u32 4, %s16
        %p123 = scmp.lt.s32.totalorder %s122, 7
        %s124 = scalar_select %p123, %s122, 7
        %s125 = smul.addr %s124, 8
        %s126 = scalar_lea.vmem %s0, %s125
        %p127 = pneg %p37
        %p128 = pneg %p34
        %p129 = pneg %p58
        %p130 = pneg %p55
        %p131 = pneg %p84
        %p132 = pneg %p81
        %s133 = sand.u32 %s71, 1
        %s134 = scalar_lea.sflag [#allocation3], %s133
        %s135 = sand.u32 %s71, 1
        %s136 = smul.addr %s135, 32
        %s137 = scalar_lea.vmem [#allocation2], %s136
        %s138 = smul.u32 4, %s16
        %p139 = scmp.lt.s32.totalorder %s138, 7
        %s140 = scalar_select %p139, %s138, 7
        %s141 = smul.addr %s140, 8
        %s142 = scalar_lea.vmem %s0, %s141
        %s143 = smul.u32 4, %s16
        %s144 = smul.u32 4, %s16
        %v145 = vld [vmem:[%s142] sm:$0xff]
        %v146 = vld [vmem:[%s142 + $0x8] sm:$0xff]
        %v147 = vld [vmem:[%s142 + $0x10] sm:$0xff]
        %v148 = vld [vmem:[%s142 + $0x18] sm:$0xff]
        %v149 = vlaneseq
        %v150 = vand.u32 %v149, 127
        %v151 = vadd.s32 %v150, 128
        %152 = vset.pattern.permute.xlu0 0
        %153 = vperm.xlu0 %152, %v145
        %v154 = vpop.permute.xlu0 %153
        %155 = vset.pattern.permute.xlu0 0
        %156 = vperm.xlu0 %155, %v146
        %v157 = vpop.permute.xlu0 %156
        %158 = vset.pattern.permute.xlu0 0
        %159 = vperm.xlu0 %158, %v147
        %v160 = vpop.permute.xlu0 %159
        %161 = vset.pattern.permute.xlu0 0
        %162 = vperm.xlu0 %161, %v148
        %v163 = vpop.permute.xlu0 %162
        %vm164 = vcmp.eq.s32.totalorder %v150, %v154
        %vm165 = vcmp.eq.s32.totalorder %v151, %v154
        %vm166 = vcmp.eq.s32.totalorder %v150, %v157
        %vm167 = vcmp.eq.s32.totalorder %v151, %v157
        %vm168 = vcmp.eq.s32.totalorder %v150, %v160
        %vm169 = vcmp.eq.s32.totalorder %v151, %v160
        %vm170 = vcmp.eq.s32.totalorder %v150, %v163
        %vm171 = vcmp.eq.s32.totalorder %v151, %v163
        %v172 = vsel %vm164, 1, 0
        %v173 = vsel %vm165, 1, 0
        %v174 = vsel %vm166, 1, 0
        %v175 = vsel %vm167, 1, 0
        %v176 = vsel %vm168, 1, 0
        %v177 = vsel %vm169, 1, 0
        %v178 = vsel %vm170, 1, 0
        %v179 = vsel %vm171, 1, 0
        %v180 = vcvt.s32.f32 %v172
        %v181 = vcvt.s32.f32 %v173
        %v182 = vcvt.s32.f32 %v174
        %v183 = vcvt.s32.f32 %v175
        %v184 = vcvt.s32.f32 %v176
        %v185 = vcvt.s32.f32 %v177
        %v186 = vcvt.s32.f32 %v178
        %v187 = vcvt.s32.f32 %v179
        %188 = vset.pattern.permute.xlu0 1
        %189 = vperm.xlu0 %188, %v145
        %v190 = vpop.permute.xlu0 %189
        %191 = vset.pattern.permute.xlu0 1
        %192 = vperm.xlu0 %191, %v146
        %v193 = vpop.permute.xlu0 %192
        %194 = vset.pattern.permute.xlu0 1
        %195 = vperm.xlu0 %194, %v147
        %v196 = vpop.permute.xlu0 %195
        %197 = vset.pattern.permute.xlu0 1
        %198 = vperm.xlu0 %197, %v148
        %v199 = vpop.permute.xlu0 %198
        %vm200 = vcmp.eq.s32.totalorder %v150, %v190
        %vm201 = vcmp.eq.s32.totalorder %v151, %v190
        %vm202 = vcmp.eq.s32.totalorder %v150, %v193
        %vm203 = vcmp.eq.s32.totalorder %v151, %v193
        %vm204 = vcmp.eq.s32.totalorder %v150, %v196
        %vm205 = vcmp.eq.s32.totalorder %v151, %v196
        %vm206 = vcmp.eq.s32.totalorder %v150, %v199
        %vm207 = vcmp.eq.s32.totalorder %v151, %v199
        %v208 = vsel %vm200, 1, 0
        %v209 = vsel %vm201, 1, 0
        %v210 = vsel %vm202, 1, 0
        %v211 = vsel %vm203, 1, 0
        %v212 = vsel %vm204, 1, 0
        %v213 = vsel %vm205, 1, 0
        %v214 = vsel %vm206, 1, 0
        %v215 = vsel %vm207, 1, 0
        %v216 = vcvt.s32.f32 %v208
        %v217 = vcvt.s32.f32 %v209
        %v218 = vcvt.s32.f32 %v210
        %v219 = vcvt.s32.f32 %v211
        %v220 = vcvt.s32.f32 %v212
        %v221 = vcvt.s32.f32 %v213
        %v222 = vcvt.s32.f32 %v214
        %v223 = vcvt.s32.f32 %v215
        %224 = vset.pattern.permute.xlu0 2
        %225 = vperm.xlu0 %224, %v145
        %v226 = vpop.permute.xlu0 %225
        %227 = vset.pattern.permute.xlu0 2
        %228 = vperm.xlu0 %227, %v146
        %v229 = vpop.permute.xlu0 %228
        %230 = vset.pattern.permute.xlu0 2
        %231 = vperm.xlu0 %230, %v147
        %v232 = vpop.permute.xlu0 %231
        %233 = vset.pattern.permute.xlu0 2
        %234 = vperm.xlu0 %233, %v148
        %v235 = vpop.permute.xlu0 %234
        %vm236 = vcmp.eq.s32.totalorder %v150, %v226
        %vm237 = vcmp.eq.s32.totalorder %v151, %v226
        %vm238 = vcmp.eq.s32.totalorder %v150, %v229
        %vm239 = vcmp.eq.s32.totalorder %v151, %v229
        %vm240 = vcmp.eq.s32.totalorder %v150, %v232
        %vm241 = vcmp.eq.s32.totalorder %v151, %v232
        %vm242 = vcmp.eq.s32.totalorder %v150, %v235
        %vm243 = vcmp.eq.s32.totalorder %v151, %v235
        %v244 = vsel %vm236, 1, 0
        %v245 = vsel %vm237, 1, 0
        %v246 = vsel %vm238, 1, 0
        %v247 = vsel %vm239, 1, 0
        %v248 = vsel %vm240, 1, 0
        %v249 = vsel %vm241, 1, 0
        %v250 = vsel %vm242, 1, 0
        %v251 = vsel %vm243, 1, 0
        %v252 = vcvt.s32.f32 %v244
        %v253 = vcvt.s32.f32 %v245
        %v254 = vcvt.s32.f32 %v246
        %v255 = vcvt.s32.f32 %v247
        %v256 = vcvt.s32.f32 %v248
        %v257 = vcvt.s32.f32 %v249
        %v258 = vcvt.s32.f32 %v250
        %v259 = vcvt.s32.f32 %v251
        %260 = vset.pattern.permute.xlu0 3
        %261 = vperm.xlu0 %260, %v145
        %v262 = vpop.permute.xlu0 %261
        %263 = vset.pattern.permute.xlu0 3
        %264 = vperm.xlu0 %263, %v146
        %v265 = vpop.permute.xlu0 %264
        %266 = vset.pattern.permute.xlu0 3
        %267 = vperm.xlu0 %266, %v147
        %v268 = vpop.permute.xlu0 %267
        %269 = vset.pattern.permute.xlu0 3
        %270 = vperm.xlu0 %269, %v148
        %v271 = vpop.permute.xlu0 %270
        %vm272 = vcmp.eq.s32.totalorder %v150, %v262
        %vm273 = vcmp.eq.s32.totalorder %v151, %v262
        %vm274 = vcmp.eq.s32.totalorder %v150, %v265
        %vm275 = vcmp.eq.s32.totalorder %v151, %v265
        %vm276 = vcmp.eq.s32.totalorder %v150, %v268
        %vm277 = vcmp.eq.s32.totalorder %v151, %v268
        %vm278 = vcmp.eq.s32.totalorder %v150, %v271
        %vm279 = vcmp.eq.s32.totalorder %v151, %v271
        %v280 = vsel %vm272, 1, 0
        %v281 = vsel %vm273, 1, 0
        %v282 = vsel %vm274, 1, 0
        %v283 = vsel %vm275, 1, 0
        %v284 = vsel %vm276, 1, 0
        %v285 = vsel %vm277, 1, 0
        %v286 = vsel %vm278, 1, 0
        %v287 = vsel %vm279, 1, 0
        %v288 = vcvt.s32.f32 %v280
        %v289 = vcvt.s32.f32 %v281
        %v290 = vcvt.s32.f32 %v282
        %v291 = vcvt.s32.f32 %v283
        %v292 = vcvt.s32.f32 %v284
        %v293 = vcvt.s32.f32 %v285
        %v294 = vcvt.s32.f32 %v286
        %v295 = vcvt.s32.f32 %v287
        %v296 = vld [vmem:[%s1] sm:$0xff]
        %v297 = vld [vmem:[%s1 + $0x8] sm:$0xff]
        %v298 = vld [vmem:[%s1 + $0x10] sm:$0xff]
        %v299 = vld [vmem:[%s1 + $0x18] sm:$0xff]
        %v300 = vld [vmem:[%s1 + $0x20] sm:$0xff]
        %v301 = vld [vmem:[%s1 + $0x28] sm:$0xff]
        %v302 = vld [vmem:[%s1 + $0x30] sm:$0xff]
        %v303 = vld [vmem:[%s1 + $0x38] sm:$0xff]
        %v304 = vld [vmem:[%s1 + $0x40] sm:$0xff]
        %v305 = vld [vmem:[%s1 + $0x48] sm:$0xff]
        %v306 = vld [vmem:[%s1 + $0x50] sm:$0xff]
        %v307 = vld [vmem:[%s1 + $0x58] sm:$0xff]
        %v308 = vld [vmem:[%s1 + $0x60] sm:$0xff]
        %v309 = vld [vmem:[%s1 + $0x68] sm:$0xff]
        %v310 = vld [vmem:[%s1 + $0x70] sm:$0xff]
        %v311 = vld [vmem:[%s1 + $0x78] sm:$0xff]
        %v312 = vld [vmem:[%s1 + $0x80] sm:$0xff]
        %v313 = vld [vmem:[%s1 + $0x88] sm:$0xff]
        %v314 = vld [vmem:[%s1 + $0x90] sm:$0xff]
        %v315 = vld [vmem:[%s1 + $0x98] sm:$0xff]
        %v316 = vld [vmem:[%s1 + $0xa0] sm:$0xff]
        %v317 = vld [vmem:[%s1 + $0xa8] sm:$0xff]
        %v318 = vld [vmem:[%s1 + $0xb0] sm:$0xff]
        %v319 = vld [vmem:[%s1 + $0xb8] sm:$0xff]
        %v320 = vld [vmem:[%s1 + $0xc0] sm:$0xff]
        %v321 = vld [vmem:[%s1 + $0xc8] sm:$0xff]
        %v322 = vld [vmem:[%s1 + $0xd0] sm:$0xff]
        %v323 = vld [vmem:[%s1 + $0xd8] sm:$0xff]
        %v324 = vld [vmem:[%s1 + $0xe0] sm:$0xff]
        %v325 = vld [vmem:[%s1 + $0xe8] sm:$0xff]
        %v326 = vld [vmem:[%s1 + $0xf0] sm:$0xff]
        %v327 = vld [vmem:[%s1 + $0xf8] sm:$0xff]
        %v328 = vld [vmem:[%s1 + $0x100] sm:$0xff]
        %v329 = vld [vmem:[%s1 + $0x108] sm:$0xff]
        %v330 = vld [vmem:[%s1 + $0x110] sm:$0xff]
        %v331 = vld [vmem:[%s1 + $0x118] sm:$0xff]
        %v332 = vld [vmem:[%s1 + $0x120] sm:$0xff]
        %v333 = vld [vmem:[%s1 + $0x128] sm:$0xff]
        %v334 = vld [vmem:[%s1 + $0x130] sm:$0xff]
        %v335 = vld [vmem:[%s1 + $0x138] sm:$0xff]
        %v336 = vld [vmem:[%s1 + $0x140] sm:$0xff]
        %v337 = vld [vmem:[%s1 + $0x148] sm:$0xff]
        %v338 = vld [vmem:[%s1 + $0x150] sm:$0xff]
        %v339 = vld [vmem:[%s1 + $0x158] sm:$0xff]
        %v340 = vld [vmem:[%s1 + $0x160] sm:$0xff]
        %v341 = vld [vmem:[%s1 + $0x168] sm:$0xff]
        %v342 = vld [vmem:[%s1 + $0x170] sm:$0xff]
        %v343 = vld [vmem:[%s1 + $0x178] sm:$0xff]
        %v344 = vld [vmem:[%s1 + $0x180] sm:$0xff]
        %v345 = vld [vmem:[%s1 + $0x188] sm:$0xff]
        %v346 = vld [vmem:[%s1 + $0x190] sm:$0xff]
        %v347 = vld [vmem:[%s1 + $0x198] sm:$0xff]
        %v348 = vld [vmem:[%s1 + $0x1a0] sm:$0xff]
        %v349 = vld [vmem:[%s1 + $0x1a8] sm:$0xff]
        %v350 = vld [vmem:[%s1 + $0x1b0] sm:$0xff]
        %v351 = vld [vmem:[%s1 + $0x1b8] sm:$0xff]
        %v352 = vld [vmem:[%s1 + $0x1c0] sm:$0xff]
        %v353 = vld [vmem:[%s1 + $0x1c8] sm:$0xff]
        %v354 = vld [vmem:[%s1 + $0x1d0] sm:$0xff]
        %v355 = vld [vmem:[%s1 + $0x1d8] sm:$0xff]
        %v356 = vld [vmem:[%s1 + $0x1e0] sm:$0xff]
        %v357 = vld [vmem:[%s1 + $0x1e8] sm:$0xff]
        %v358 = vld [vmem:[%s1 + $0x1f0] sm:$0xff]
        %v359 = vld [vmem:[%s1 + $0x1f8] sm:$0xff]
        %v360 = vld [vmem:[%s1 + $0x200] sm:$0xff]
        %v361 = vld [vmem:[%s1 + $0x208] sm:$0xff]
        %v362 = vld [vmem:[%s1 + $0x210] sm:$0xff]
        %v363 = vld [vmem:[%s1 + $0x218] sm:$0xff]
        %v364 = vld [vmem:[%s1 + $0x220] sm:$0xff]
        %v365 = vld [vmem:[%s1 + $0x228] sm:$0xff]
        %v366 = vld [vmem:[%s1 + $0x230] sm:$0xff]
        %v367 = vld [vmem:[%s1 + $0x238] sm:$0xff]
        %v368 = vld [vmem:[%s1 + $0x240] sm:$0xff]
        %v369 = vld [vmem:[%s1 + $0x248] sm:$0xff]
        %v370 = vld [vmem:[%s1 + $0x250] sm:$0xff]
        %v371 = vld [vmem:[%s1 + $0x258] sm:$0xff]
        %v372 = vld [vmem:[%s1 + $0x260] sm:$0xff]
        %v373 = vld [vmem:[%s1 + $0x268] sm:$0xff]
        %v374 = vld [vmem:[%s1 + $0x270] sm:$0xff]
        %v375 = vld [vmem:[%s1 + $0x278] sm:$0xff]
        %v376 = vld [vmem:[%s1 + $0x280] sm:$0xff]
        %v377 = vld [vmem:[%s1 + $0x288] sm:$0xff]
        %v378 = vld [vmem:[%s1 + $0x290] sm:$0xff]
        %v379 = vld [vmem:[%s1 + $0x298] sm:$0xff]
        %v380 = vld [vmem:[%s1 + $0x2a0] sm:$0xff]
        %v381 = vld [vmem:[%s1 + $0x2a8] sm:$0xff]
        %v382 = vld [vmem:[%s1 + $0x2b0] sm:$0xff]
        %v383 = vld [vmem:[%s1 + $0x2b8] sm:$0xff]
        %v384 = vld [vmem:[%s1 + $0x2c0] sm:$0xff]
        %v385 = vld [vmem:[%s1 + $0x2c8] sm:$0xff]
        %v386 = vld [vmem:[%s1 + $0x2d0] sm:$0xff]
        %v387 = vld [vmem:[%s1 + $0x2d8] sm:$0xff]
        %v388 = vld [vmem:[%s1 + $0x2e0] sm:$0xff]
        %v389 = vld [vmem:[%s1 + $0x2e8] sm:$0xff]
        %v390 = vld [vmem:[%s1 + $0x2f0] sm:$0xff]
        %v391 = vld [vmem:[%s1 + $0x2f8] sm:$0xff]
        %v392 = vld [vmem:[%s1 + $0x300] sm:$0xff]
        %v393 = vld [vmem:[%s1 + $0x308] sm:$0xff]
        %v394 = vld [vmem:[%s1 + $0x310] sm:$0xff]
        %v395 = vld [vmem:[%s1 + $0x318] sm:$0xff]
        %v396 = vld [vmem:[%s1 + $0x320] sm:$0xff]
        %v397 = vld [vmem:[%s1 + $0x328] sm:$0xff]
        %v398 = vld [vmem:[%s1 + $0x330] sm:$0xff]
        %v399 = vld [vmem:[%s1 + $0x338] sm:$0xff]
        %v400 = vld [vmem:[%s1 + $0x340] sm:$0xff]
        %v401 = vld [vmem:[%s1 + $0x348] sm:$0xff]
        %v402 = vld [vmem:[%s1 + $0x350] sm:$0xff]
        %v403 = vld [vmem:[%s1 + $0x358] sm:$0xff]
        %v404 = vld [vmem:[%s1 + $0x360] sm:$0xff]
        %v405 = vld [vmem:[%s1 + $0x368] sm:$0xff]
        %v406 = vld [vmem:[%s1 + $0x370] sm:$0xff]
        %v407 = vld [vmem:[%s1 + $0x378] sm:$0xff]
        %v408 = vld [vmem:[%s1 + $0x380] sm:$0xff]
        %v409 = vld [vmem:[%s1 + $0x388] sm:$0xff]
        %v410 = vld [vmem:[%s1 + $0x390] sm:$0xff]
        %v411 = vld [vmem:[%s1 + $0x398] sm:$0xff]
        %v412 = vld [vmem:[%s1 + $0x3a0] sm:$0xff]
        %v413 = vld [vmem:[%s1 + $0x3a8] sm:$0xff]
        %v414 = vld [vmem:[%s1 + $0x3b0] sm:$0xff]
        %v415 = vld [vmem:[%s1 + $0x3b8] sm:$0xff]
        %v416 = vld [vmem:[%s1 + $0x3c0] sm:$0xff]
        %v417 = vld [vmem:[%s1 + $0x3c8] sm:$0xff]
        %v418 = vld [vmem:[%s1 + $0x3d0] sm:$0xff]
        %v419 = vld [vmem:[%s1 + $0x3d8] sm:$0xff]
        %v420 = vld [vmem:[%s1 + $0x3e0] sm:$0xff]
        %v421 = vld [vmem:[%s1 + $0x3e8] sm:$0xff]
        %v422 = vld [vmem:[%s1 + $0x3f0] sm:$0xff]
        %v423 = vld [vmem:[%s1 + $0x3f8] sm:$0xff]
        %424 = vmatprep.subr.mxu0 0.0
        %425 = vmatpush1.msra.mxu0 %v296
        %426 = vmatprep.subr.mxu0 0.0
        %427 = vmatpush1.msra.mxu0 %v297
        %428 = vmatprep.subr.mxu0 0.0
        %429 = vmatpush1.msra.mxu0 %v298
        %430 = vmatprep.subr.mxu0 0.0
        %431 = vmatpush1.msra.mxu0 %v299
        %432 = vmatprep.subr.mxu0 0.0
        %433 = vmatpush1.msra.mxu0 %v300
        %434 = vmatprep.subr.mxu0 0.0
        %435 = vmatpush1.msra.mxu0 %v301
        %436 = vmatprep.subr.mxu0 0.0
        %437 = vmatpush1.msra.mxu0 %v302
        %438 = vmatprep.subr.mxu0 0.0
        %439 = vmatpush1.msra.mxu0 %v303
        %440 = vmatprep.subr.mxu0 0.0
        %441 = vmatpush1.msra.mxu0 %v304
        %442 = vmatprep.subr.mxu0 0.0
        %443 = vmatpush1.msra.mxu0 %v305
        %444 = vmatprep.subr.mxu0 0.0
        %445 = vmatpush1.msra.mxu0 %v306
        %446 = vmatprep.subr.mxu0 0.0
        %447 = vmatpush1.msra.mxu0 %v307
        %448 = vmatprep.subr.mxu0 0.0
        %449 = vmatpush1.msra.mxu0 %v308
        %450 = vmatprep.subr.mxu0 0.0
        %451 = vmatpush1.msra.mxu0 %v309
        %452 = vmatprep.subr.mxu0 0.0
        %453 = vmatpush1.msra.mxu0 %v310
        %454 = vmatprep.subr.mxu0 0.0
        %455 = vmatpush1.msra.mxu0 %v311
        %456 = vmatprep.subr.mxu0 0.0
        %457 = vmatpush1.msra.mxu0 %v312
        %458 = vmatprep.subr.mxu0 0.0
        %459 = vmatpush1.msra.mxu0 %v313
        %460 = vmatprep.subr.mxu0 0.0
        %461 = vmatpush1.msra.mxu0 %v314
        %462 = vmatprep.subr.mxu0 0.0
        %463 = vmatpush1.msra.mxu0 %v315
        %464 = vmatprep.subr.mxu0 0.0
        %465 = vmatpush1.msra.mxu0 %v316
        %466 = vmatprep.subr.mxu0 0.0
        %467 = vmatpush1.msra.mxu0 %v317
        %468 = vmatprep.subr.mxu0 0.0
        %469 = vmatpush1.msra.mxu0 %v318
        %470 = vmatprep.subr.mxu0 0.0
        %471 = vmatpush1.msra.mxu0 %v319
        %472 = vmatprep.subr.mxu0 0.0
        %473 = vmatpush1.msra.mxu0 %v320
        %474 = vmatprep.subr.mxu0 0.0
        %475 = vmatpush1.msra.mxu0 %v321
        %476 = vmatprep.subr.mxu0 0.0
        %477 = vmatpush1.msra.mxu0 %v322
        %478 = vmatprep.subr.mxu0 0.0
        %479 = vmatpush1.msra.mxu0 %v323
        %480 = vmatprep.subr.mxu0 0.0
        %481 = vmatpush1.msra.mxu0 %v324
        %482 = vmatprep.subr.mxu0 0.0
        %483 = vmatpush1.msra.mxu0 %v325
        %484 = vmatprep.subr.mxu0 0.0
        %485 = vmatpush1.msra.mxu0 %v326
        %486 = vmatprep.subr.mxu0 0.0
        %487 = vmatpush1.msra.mxu0 %v327
        %488 = vmatprep.mubr.f32.mxu0 %v181
        %489 = vmatmul.mubr.f32.gmra.mrb[0].mxu0 %v180
        %v490 = vpop.f32.mrb[0].mxu0
        %v491 = vadd.f32 0.0, %v490
        %v492 = vpop.f32.mrb[0].mxu0
        %493 = vmatprep.mubr.f32.mxu0 %v183
        %494 = vmatmul.mubr.f32.gmra.mrb[0].mxu0 %v182
        %v495 = vpop.f32.mrb[0].mxu0
        %v496 = vadd.f32 0.0, %v495
        %v497 = vpop.f32.mrb[0].mxu0
        %498 = vmatprep.mubr.f32.mxu0 %v185
        %499 = vmatmul.mubr.f32.gmra.mrb[0].mxu0 %v184
        %v500 = vpop.f32.mrb[0].mxu0
        %v501 = vadd.f32 0.0, %v500
        %v502 = vpop.f32.mrb[0].mxu0
        %503 = vmatprep.mubr.f32.mxu0 %v187
        %504 = vmatmul.mubr.f32.gmra.mrb[0].mxu0 %v186
        %v505 = vpop.f32.mrb[0].mxu0
        %v506 = vadd.f32 0.0, %v505
        %v507 = vpop.f32.mrb[0].mxu0
        %508 = vdwg.mxu0
        %509 = vmatprep.subr.mxu0 0.0
        %510 = vmatpush1.msra.mxu0 %v328
        %511 = vmatprep.subr.mxu0 0.0
        %512 = vmatpush1.msra.mxu0 %v329
        %513 = vmatprep.subr.mxu0 0.0
        %514 = vmatpush1.msra.mxu0 %v330
        %515 = vmatprep.subr.mxu0 0.0
        %516 = vmatpush1.msra.mxu0 %v331
        %517 = vmatprep.subr.mxu0 0.0
        %518 = vmatpush1.msra.mxu0 %v332
        %519 = vmatprep.subr.mxu0 0.0
        %520 = vmatpush1.msra.mxu0 %v333
        %521 = vmatprep.subr.mxu0 0.0
        %522 = vmatpush1.msra.mxu0 %v334
        %523 = vmatprep.subr.mxu0 0.0
        %524 = vmatpush1.msra.mxu0 %v335
        %525 = vmatprep.subr.mxu0 0.0
        %526 = vmatpush1.msra.mxu0 %v336
        %527 = vmatprep.subr.mxu0 0.0
        %528 = vmatpush1.msra.mxu0 %v337
        %529 = vmatprep.subr.mxu0 0.0
        %530 = vmatpush1.msra.mxu0 %v338
        %531 = vmatprep.subr.mxu0 0.0
        %532 = vmatpush1.msra.mxu0 %v339
        %533 = vmatprep.subr.mxu0 0.0
        %534 = vmatpush1.msra.mxu0 %v340
        %535 = vmatprep.subr.mxu0 0.0
        %536 = vmatpush1.msra.mxu0 %v341
        %537 = vmatprep.subr.mxu0 0.0
        %538 = vmatpush1.msra.mxu0 %v342
        %539 = vmatprep.subr.mxu0 0.0
        %540 = vmatpush1.msra.mxu0 %v343
        %541 = vmatprep.subr.mxu0 0.0
        %542 = vmatpush1.msra.mxu0 %v344
        %543 = vmatprep.subr.mxu0 0.0
        %544 = vmatpush1.msra.mxu0 %v345
        %545 = vmatprep.subr.mxu0 0.0
        %546 = vmatpush1.msra.mxu0 %v346
        %547 = vmatprep.subr.mxu0 0.0
        %548 = vmatpush1.msra.mxu0 %v347
        %549 = vmatprep.subr.mxu0 0.0
        %550 = vmatpush1.msra.mxu0 %v348
        %551 = vmatprep.subr.mxu0 0.0
        %552 = vmatpush1.msra.mxu0 %v349
        %553 = vmatprep.subr.mxu0 0.0
        %554 = vmatpush1.msra.mxu0 %v350
        %555 = vmatprep.subr.mxu0 0.0
        %556 = vmatpush1.msra.mxu0 %v351
        %557 = vmatprep.subr.mxu0 0.0
        %558 = vmatpush1.msra.mxu0 %v352
        %559 = vmatprep.subr.mxu0 0.0
        %560 = vmatpush1.msra.mxu0 %v353
        %561 = vmatprep.subr.mxu0 0.0
        %562 = vmatpush1.msra.mxu0 %v354
        %563 = vmatprep.subr.mxu0 0.0
        %564 = vmatpush1.msra.mxu0 %v355
        %565 = vmatprep.subr.mxu0 0.0
        %566 = vmatpush1.msra.mxu0 %v356
        %567 = vmatprep.subr.mxu0 0.0
        %568 = vmatpush1.msra.mxu0 %v357
        %569 = vmatprep.subr.mxu0 0.0
        %570 = vmatpush1.msra.mxu0 %v358
        %571 = vmatprep.subr.mxu0 0.0
        %572 = vmatpush1.msra.mxu0 %v359
        %573 = vmatprep.mubr.f32.mxu0 %v217
        %574 = vmatmul.mubr.f32.gmra.mrb[0].mxu0 %v216
        %v575 = vpop.f32.mrb[0].mxu0
        %v576 = vadd.f32 %v491, %v575
        %v577 = vpop.f32.mrb[0].mxu0
        %578 = vmatprep.mubr.f32.mxu0 %v219
        %579 = vmatmul.mubr.f32.gmra.mrb[0].mxu0 %v218
        %v580 = vpop.f32.mrb[0].mxu0
        %v581 = vadd.f32 %v496, %v580
        %v582 = vpop.f32.mrb[0].mxu0
        %583 = vmatprep.mubr.f32.mxu0 %v221
        %584 = vmatmul.mubr.f32.gmra.mrb[0].mxu0 %v220
        %v585 = vpop.f32.mrb[0].mxu0
        %v586 = vadd.f32 %v501, %v585
        %v587 = vpop.f32.mrb[0].mxu0
        %588 = vmatprep.mubr.f32.mxu0 %v223
        %589 = vmatmul.mubr.f32.gmra.mrb[0].mxu0 %v222
        %v590 = vpop.f32.mrb[0].mxu0
        %v591 = vadd.f32 %v506, %v590
        %v592 = vpop.f32.mrb[0].mxu0
        %593 = vdwg.mxu0
        %594 = vmatprep.subr.mxu0 0.0
        %595 = vmatpush1.msra.mxu0 %v360
        %596 = vmatprep.subr.mxu0 0.0
        %597 = vmatpush1.msra.mxu0 %v361
        %598 = vmatprep.subr.mxu0 0.0
        %599 = vmatpush1.msra.mxu0 %v362
        %600 = vmatprep.subr.mxu0 0.0
        %601 = vmatpush1.msra.mxu0 %v363
        %602 = vmatprep.subr.mxu0 0.0
        %603 = vmatpush1.msra.mxu0 %v364
        %604 = vmatprep.subr.mxu0 0.0
        %605 = vmatpush1.msra.mxu0 %v365
        %606 = vmatprep.subr.mxu0 0.0
        %607 = vmatpush1.msra.mxu0 %v366
        %608 = vmatprep.subr.mxu0 0.0
        %609 = vmatpush1.msra.mxu0 %v367
        %610 = vmatprep.subr.mxu0 0.0
        %611 = vmatpush1.msra.mxu0 %v368
        %612 = vmatprep.subr.mxu0 0.0
        %613 = vmatpush1.msra.mxu0 %v369
        %614 = vmatprep.subr.mxu0 0.0
        %615 = vmatpush1.msra.mxu0 %v370
        %616 = vmatprep.subr.mxu0 0.0
        %617 = vmatpush1.msra.mxu0 %v371
        %618 = vmatprep.subr.mxu0 0.0
        %619 = vmatpush1.msra.mxu0 %v372
        %620 = vmatprep.subr.mxu0 0.0
        %621 = vmatpush1.msra.mxu0 %v373
        %622 = vmatprep.subr.mxu0 0.0
        %623 = vmatpush1.msra.mxu0 %v374
        %624 = vmatprep.subr.mxu0 0.0
        %625 = vmatpush1.msra.mxu0 %v375
        %626 = vmatprep.subr.mxu0 0.0
        %627 = vmatpush1.msra.mxu0 %v376
        %628 = vmatprep.subr.mxu0 0.0
        %629 = vmatpush1.msra.mxu0 %v377
        %630 = vmatprep.subr.mxu0 0.0
        %631 = vmatpush1.msra.mxu0 %v378
        %632 = vmatprep.subr.mxu0 0.0
        %633 = vmatpush1.msra.mxu0 %v379
        %634 = vmatprep.subr.mxu0 0.0
        %635 = vmatpush1.msra.mxu0 %v380
        %636 = vmatprep.subr.mxu0 0.0
        %637 = vmatpush1.msra.mxu0 %v381
        %638 = vmatprep.subr.mxu0 0.0
        %639 = vmatpush1.msra.mxu0 %v382
        %640 = vmatprep.subr.mxu0 0.0
        %641 = vmatpush1.msra.mxu0 %v383
        %642 = vmatprep.subr.mxu0 0.0
        %643 = vmatpush1.msra.mxu0 %v384
        %644 = vmatprep.subr.mxu0 0.0
        %645 = vmatpush1.msra.mxu0 %v385
        %646 = vmatprep.subr.mxu0 0.0
        %647 = vmatpush1.msra.mxu0 %v386
        %648 = vmatprep.subr.mxu0 0.0
        %649 = vmatpush1.msra.mxu0 %v387
        %650 = vmatprep.subr.mxu0 0.0
        %651 = vmatpush1.msra.mxu0 %v388
        %652 = vmatprep.subr.mxu0 0.0
        %653 = vmatpush1.msra.mxu0 %v389
        %654 = vmatprep.subr.mxu0 0.0
        %655 = vmatpush1.msra.mxu0 %v390
        %656 = vmatprep.subr.mxu0 0.0
        %657 = vmatpush1.msra.mxu0 %v391
        %658 = vmatprep.mubr.f32.mxu0 %v253
        %659 = vmatmul.mubr.f32.gmra.mrb[0].mxu0 %v252
        %v660 = vpop.f32.mrb[0].mxu0
        %v661 = vadd.f32 %v576, %v660
        %v662 = vpop.f32.mrb[0].mxu0
        %663 = vmatprep.mubr.f32.mxu0 %v255
        %664 = vmatmul.mubr.f32.gmra.mrb[0].mxu0 %v254
        %v665 = vpop.f32.mrb[0].mxu0
        %v666 = vadd.f32 %v581, %v665
        %v667 = vpop.f32.mrb[0].mxu0
        %668 = vmatprep.mubr.f32.mxu0 %v257
        %669 = vmatmul.mubr.f32.gmra.mrb[0].mxu0 %v256
        %v670 = vpop.f32.mrb[0].mxu0
        %v671 = vadd.f32 %v586, %v670
        %v672 = vpop.f32.mrb[0].mxu0
        %673 = vmatprep.mubr.f32.mxu0 %v259
        %674 = vmatmul.mubr.f32.gmra.mrb[0].mxu0 %v258
        %v675 = vpop.f32.mrb[0].mxu0
        %v676 = vadd.f32 %v591, %v675
        %v677 = vpop.f32.mrb[0].mxu0
        %678 = vdwg.mxu0
        %679 = vmatprep.subr.mxu0 0.0
        %680 = vmatpush1.msra.mxu0 %v392
        %681 = vmatprep.subr.mxu0 0.0
        %682 = vmatpush1.msra.mxu0 %v393
        %683 = vmatprep.subr.mxu0 0.0
        %684 = vmatpush1.msra.mxu0 %v394
        %685 = vmatprep.subr.mxu0 0.0
        %686 = vmatpush1.msra.mxu0 %v395
        %687 = vmatprep.subr.mxu0 0.0
        %688 = vmatpush1.msra.mxu0 %v396
        %689 = vmatprep.subr.mxu0 0.0
        %690 = vmatpush1.msra.mxu0 %v397
        %691 = vmatprep.subr.mxu0 0.0
        %692 = vmatpush1.msra.mxu0 %v398
        %693 = vmatprep.subr.mxu0 0.0
        %694 = vmatpush1.msra.mxu0 %v399
        %695 = vmatprep.subr.mxu0 0.0
        %696 = vmatpush1.msra.mxu0 %v400
        %697 = vmatprep.subr.mxu0 0.0
        %698 = vmatpush1.msra.mxu0 %v401
        %699 = vmatprep.subr.mxu0 0.0
        %700 = vmatpush1.msra.mxu0 %v402
        %701 = vmatprep.subr.mxu0 0.0
        %702 = vmatpush1.msra.mxu0 %v403
        %703 = vmatprep.subr.mxu0 0.0
        %704 = vmatpush1.msra.mxu0 %v404
        %705 = vmatprep.subr.mxu0 0.0
        %706 = vmatpush1.msra.mxu0 %v405
        %707 = vmatprep.subr.mxu0 0.0
        %708 = vmatpush1.msra.mxu0 %v406
        %709 = vmatprep.subr.mxu0 0.0
        %710 = vmatpush1.msra.mxu0 %v407
        %711 = vmatprep.subr.mxu0 0.0
        %712 = vmatpush1.msra.mxu0 %v408
        %713 = vmatprep.subr.mxu0 0.0
        %714 = vmatpush1.msra.mxu0 %v409
        %715 = vmatprep.subr.mxu0 0.0
        %716 = vmatpush1.msra.mxu0 %v410
        %717 = vmatprep.subr.mxu0 0.0
        %718 = vmatpush1.msra.mxu0 %v411
        %719 = vmatprep.subr.mxu0 0.0
        %720 = vmatpush1.msra.mxu0 %v412
        %721 = vmatprep.subr.mxu0 0.0
        %722 = vmatpush1.msra.mxu0 %v413
        %723 = vmatprep.subr.mxu0 0.0
        %724 = vmatpush1.msra.mxu0 %v414
        %725 = vmatprep.subr.mxu0 0.0
        %726 = vmatpush1.msra.mxu0 %v415
        %727 = vmatprep.subr.mxu0 0.0
        %728 = vmatpush1.msra.mxu0 %v416
        %729 = vmatprep.subr.mxu0 0.0
        %730 = vmatpush1.msra.mxu0 %v417
        %731 = vmatprep.subr.mxu0 0.0
        %732 = vmatpush1.msra.mxu0 %v418
        %733 = vmatprep.subr.mxu0 0.0
        %734 = vmatpush1.msra.mxu0 %v419
        %735 = vmatprep.subr.mxu0 0.0
        %736 = vmatpush1.msra.mxu0 %v420
        %737 = vmatprep.subr.mxu0 0.0
        %738 = vmatpush1.msra.mxu0 %v421
        %739 = vmatprep.subr.mxu0 0.0
        %740 = vmatpush1.msra.mxu0 %v422
        %741 = vmatprep.subr.mxu0 0.0
        %742 = vmatpush1.msra.mxu0 %v423
        %743 = vmatprep.mubr.f32.mxu0 %v289
        %744 = vmatmul.mubr.f32.gmra.mrb[0].mxu0 %v288
        %v745 = vpop.f32.mrb[0].mxu0
        %v746 = vadd.f32 %v661, %v745
        %v747 = vpop.f32.mrb[0].mxu0
        %748 = vmatprep.mubr.f32.mxu0 %v291
        %749 = vmatmul.mubr.f32.gmra.mrb[0].mxu0 %v290
        %v750 = vpop.f32.mrb[0].mxu0
        %v751 = vadd.f32 %v666, %v750
        %v752 = vpop.f32.mrb[0].mxu0
        %753 = vmatprep.mubr.f32.mxu0 %v293
        %754 = vmatmul.mubr.f32.gmra.mrb[0].mxu0 %v292
        %v755 = vpop.f32.mrb[0].mxu0
        %v756 = vadd.f32 %v671, %v755
        %v757 = vpop.f32.mrb[0].mxu0
        %758 = vmatprep.mubr.f32.mxu0 %v295
        %759 = vmatmul.mubr.f32.gmra.mrb[0].mxu0 %v294
        %v760 = vpop.f32.mrb[0].mxu0
        %v761 = vadd.f32 %v676, %v760
        %v762 = vpop.f32.mrb[0].mxu0
        %763 = vdwg.mxu0
        %vm764 = vcmask 523264
        %765 = vst.msk [vmem:[%s137] sm:$0xff] %vm764, %v746
        %766 = vst.msk [vmem:[%s137 + $0x8] sm:$0xff] %vm764, %v751
        %767 = vst.msk [vmem:[%s137 + $0x10] sm:$0xff] %vm764, %v756
        %768 = vst.msk [vmem:[%s137 + $0x18] sm:$0xff] %vm764, %v761
        %s769 = sand.u32 %s71, 1
        %s770 = scalar_lea.sflag [#allocation3], %s769
        %s771 = sand.u32 %s71, 1
        %s772 = smul.addr %s771, 32
        %s773 = scalar_lea.vmem [#allocation2], %s772
        // Predicated region
        $region29: #{atom_encoder_forward.1} parent=27 // pred_check
          %p774 = pneg %p81
        $region30: #{atom_encoder_forward.1} parent=27 // pred_check_branch
          %776 = sbr.rel (%p774) target = $region32
        $region31: #{atom_encoder_forward.1} parent=27 // pred_region
          %s777 = smul.u32 4, %s16
          %s779 = ssub.s32 512, 512
          %780 = vsyncadd %s770, %s779
          %s781 = smul.addr %s777, 128
          %s782 = scalar_lea.hbm %s2, %s781
          %s783 = sshll.u32 %s773, 4
          %s784 = int_to_ptr.vmem [resolvable:$true] %s783
          %789 = dma.vmem_to_hbm [thread:$0]  %s784, 512, %s782, %s770, 128, 128, 8
        $region32: #{atom_encoder_forward.1} parent=27 // pred_fallthru
          _
      $region28: #{atom_encoder_forward.1} parent=5 // pred_fallthru
        _
      %p790 = scmp.le.s32.totalorder 2, %s11
      // Predicated region
      $region33: #{atom_encoder_forward.1} parent=5 // pred_check
        %p791 = pneg %p790
      $region34: #{atom_encoder_forward.1} parent=5 // pred_check_branch
        %793 = sbr.rel (%p791) target = $region36
      $region35: #{atom_encoder_forward.1} parent=5 // pred_region
        %s794 = ssub.s32 %s11, 2
        // Predicated region
        $region37: #{atom_encoder_forward.1} parent=35 // pred_check
          %p795 = pneg %p87
        $region38: #{atom_encoder_forward.1} parent=35 // pred_check_branch
          %797 = sbr.rel (%p795) target = $region40
        $region39: #{atom_encoder_forward.1} parent=35 // pred_region
          %s798 = sand.u32 %s72, 1
          %s799 = scalar_lea.sflag [#allocation3], %s798
          %s800 = sand.u32 %s72, 1
          %s801 = smul.addr %s800, 32
          %s802 = scalar_lea.vmem [#allocation2], %s801
          %803 = dma.done %s799, 512
        $region40: #{atom_encoder_forward.1} parent=35 // pred_fallthru
          _
      $region36: #{atom_encoder_forward.1} parent=5 // pred_fallthru
        _
    $region6: #{atom_encoder_forward.1} parent=1 // loop_footer
      %s15 = sadd.s32 1, %s11
    $region7: #{atom_encoder_forward.1} parent=1 // loop_footer_branch
      %10 = sbr.rel target = $region3
    $region8: #{atom_encoder_forward.1} parent=1 // loop_exit
      _
    %804 = vsyncpa [#allocation3], 1
    %s805 = scalar_lea.sflag [#allocation3], 1
    %806 = vsyncpa %s805, 1

</llo_original>
